<compile_context>
chip_gen: v7x
topology: tpu7x:2x2x1
jax: 0.10.0
libtpu: 0.0.40
codegen_flags: <defaults>
</compile_context>

<pallas_src>
import jax
import jax.numpy as jnp
from jax import lax
from jax.experimental import pallas as pl
from jax.experimental.pallas import tpu as pltpu


# ---------------------------------------------------------------------------
# Kernels
# ---------------------------------------------------------------------------
def _zi_cosine_kernel(xb_ref, xt_ref, zi_ref):
    """Partial row sums of q = exp(2*<x_i,x_j>) over one (TM, TN) tile.

    xb_ref : (TM, D)  row block of (normalized) feats
    xt_ref : (D, TN)  column block of pre-transposed feats (native MXU layout)
    zi_ref : (TM, 1)  f32 output, resident accumulator across the column axis
    """
    j = pl.program_id(1)

    @pl.when(j == 0)
    def _():
        zi_ref[...] = jnp.zeros_like(zi_ref)

    g = lax.dot_general(xb_ref[...], xt_ref[...], (((1,), (0,)), ((), ())),
                        preferred_element_type=jnp.float32)          # (TM, TN)
    q = jnp.exp(g * 2.0)                       # temp = 0.5 -> exp(sim / 0.5)
    zi_ref[...] += jnp.sum(q, axis=1, keepdims=True)                 # (TM, 1)


def _zi_cauchy_kernel(xb_ref, xt_ref, sqc_ref, sqr_ref, zi_ref):
    """Partial row sums of q = 1/(1 + cdist^2) over one (TM, TN) tile.

    sqc_ref : (TM, 1) f32 ||x_i||^2 column block (kept in f32)
    sqr_ref : (1, TN) f32 ||x_j||^2 row block
    """
    j = pl.program_id(1)

    @pl.when(j == 0)
    def _():
        zi_ref[...] = jnp.zeros_like(zi_ref)

    g = lax.dot_general(xb_ref[...], xt_ref[...], (((1,), (0,)), ((), ())),
                        preferred_element_type=jnp.float32)          # (TM, TN)
    # cdist(x,x)^2 = ||x_i||^2 + ||x_j||^2 - 2<x_i,x_j>, clamped at 0.
    d2 = jnp.maximum(sqc_ref[...] + sqr_ref[...] - 2.0 * g, 0.0)
    x = 1.0 + d2
    # EUP approx reciprocal + one Newton-Raphson refinement (~1e-6 rel err)
    # instead of an exact per-element divide over the whole tile.
    y = pl.reciprocal(x, approx=True)
    q = y * (2.0 - x * y)
    zi_ref[...] += jnp.sum(q, axis=1, keepdims=True)


def _loss_kernel(qii_ref, z_ref, loss_ref):
    """loss[i, j] = -qii[j] / z[i]   (rank-1 broadcast, lane-dense store).

    qii_ref  : (1, M)  f32, grid-invariant row
    z_ref    : (TL, 1) f32 momentum-mixed normalizer block
    loss_ref : (TL, M) output block
    """
    inv_z = pl.reciprocal(z_ref[...], approx=False)                  # (TL, 1)
    loss_ref[...] = ((-qii_ref[...]) * inv_z).astype(loss_ref.dtype)


# ---------------------------------------------------------------------------
# Tiling / VMEM helpers
# ---------------------------------------------------------------------------
def _vmem_budget_bytes():
    """~70% of this generation's physical VMEM (64 MiB fallback is v7x-safe)."""
    try:
        cap = int(pltpu.get_tpu_info().vmem_capacity_bytes)
    except Exception:  # no TPU info available -> conservative default
        cap = 64 << 20
    return max(int(cap * 0.7), 16 << 20)


def _divisor_tiles(cands, full):
    return [c for c in cands if c <= full and full % c == 0]


def _pick_tiles_z(M, D, mm_bytes, budget):
    """(TM, TN) for the z_i kernel: largest MXU-friendly tiles in budget."""
    tm_cands = _divisor_tiles((512, 256, 128, 64, 32, 16, 8), M) or [M]
    tn_cands = _divisor_tiles((2048, 1024, 512, 256, 128), M) or [M]
    for tm in tm_cands:            # prefer TM >= 256 (full MXU row tile)
        for tn in tn_cands:        # then the widest column tile that fits
            work = (2 * tm * D * mm_bytes        # xb stream, double-buffered
                    + 2 * D * tn * mm_bytes      # x^T column stream
                    + 2 * (tm + tn) * 4 * 2      # sq col/row streams (cauchy)
                    + 2 * tm * 4                 # z_i output
                    + 4 * tm * tn * 4)           # g/d2/q f32 intermediates + headroom
            if work <= budget:
                return tm, tn
    return tm_cands[-1], tn_cands[-1]


def _pick_tl(M, budget):
    """Row tile for the rank-1 loss kernel (output block is (TL, M))."""
    cands = _divisor_tiles((1024, 512, 256, 128, 64, 32, 16, 8), M) or [M]
    for tl in cands:
        work = 2 * tl * M * 4 + 2 * M * 4 + 2 * tl * 4
        if work <= budget:
            return tl
    return cands[-1]


# ---------------------------------------------------------------------------
# State & forward
# ---------------------------------------------------------------------------
def init_state(N, rho=-1.0, alpha=0.5, S_init=1.0):
    """Buffers of CLSABase.__init__ (deterministic, no checkpoint)."""
    f32 = jnp.float32
    return dict(
        xi=jnp.zeros((), f32),
        omega=jnp.zeros((), f32),
        N=jnp.asarray(float(N), f32),
        s_inv=jnp.zeros((N,), f32) + float(N) ** S_init,
        alpha=jnp.asarray(alpha, f32),
        rho=jnp.asarray(rho, f32),
        qii=jnp.zeros((), f32),
        qij=jnp.zeros((), f32),
        qcoeff=jnp.zeros((), f32),
    )


def clsa_v3_global_loss(feats, idx, state, metric="cauchy",
                        loss_dtype=jnp.float32):
    """Forward pass of CLSAv3GlobalLoss.  Returns (loss, new_state)."""
    del idx  # CLSAv3GlobalLoss.forward ignores idx
    in_dtype = feats.dtype
    x32 = feats.astype(jnp.float32)
    M, D = x32.shape
    B = M // 2
    N, s_inv = state["N"], state["s_inv"]
    alpha, rho, omega = state["alpha"], state["rho"], state["omega"]

    # ---- O(M*D) per-sample auxiliaries in plain JAX (f32) ----
    if metric == "cosine":
        nrm = jnp.maximum(
            jnp.sqrt(jnp.sum(x32 * x32, axis=1, keepdims=True)), 1e-12)
        x_in = x32 / nrm                        # F.normalize(feats, dim=1)
    elif metric == "cauchy":
        x_in = x32
    else:
        raise ValueError(f"unsupported metric {metric}")

    x_roll = jnp.concatenate([x_in[B:], x_in[:B]], axis=0)   # x[(j+B) % M]
    sq = jnp.sum(x_in * x_in, axis=1)                         # (M,) f32
    cross = jnp.sum(x_in * x_roll, axis=1)                    # <x_j, x_{j+B}>
    if metric == "cosine":
        qii_row = jnp.exp(cross * 2.0)                        # temp = 0.5
    else:
        sq_roll = jnp.concatenate([sq[B:], sq[:B]], axis=0)
        d2_pos = jnp.maximum(sq + sq_roll - 2.0 * cross, 0.0)
        qii_row = 1.0 / (1.0 + d2_pos)

    # ---- matmul operands: bf16 if the model already gives bf16, else f32 ----
    mm_dtype = jnp.bfloat16 if in_dtype == jnp.bfloat16 else jnp.float32
    mm_bytes = 2 if mm_dtype == jnp.bfloat16 else 4
    xb_mm = x_in.astype(mm_dtype)              # (M, D) LHS row blocks
    xt_mm = xb_mm.T                            # (D, M) pre-transposed RHS

    budget = _vmem_budget_bytes()
    TM, TN = _pick_tiles_z(M, D, mm_bytes, budget)
    grid_z = (M // TM, M // TN)

    if metric == "cauchy":
        z_kernel = _zi_cauchy_kernel
        operands = (xb_mm, xt_mm, sq.reshape(M, 1), sq.reshape(1, M))
        in_specs = [
            pl.BlockSpec((TM, D), lambda i, j: (i, 0)),       # feats row block
            pl.BlockSpec((D, TN), lambda i, j: (0, j)),       # feats^T col block
            pl.BlockSpec((TM, 1), lambda i, j: (i, 0)),       # ||x||^2 col (f32)
            pl.BlockSpec((1, TN), lambda i, j: (0, j)),       # ||x||^2 row (f32)
        ]
    else:
        z_kernel = _zi_cosine_kernel
        operands = (xb_mm, xt_mm)
        in_specs = [
            pl.BlockSpec((TM, D), lambda i, j: (i, 0)),
            pl.BlockSpec((D, TN), lambda i, j: (0, j)),
        ]

    z_i = pl.pallas_call(
        z_kernel,
        grid=grid_z,
        out_shape=jax.ShapeDtypeStruct((M, 1), jnp.float32),
        in_specs=in_specs,
        out_specs=pl.BlockSpec((TM, 1), lambda i, j: (i, 0)),  # resident over j
        compiler_params=pltpu.CompilerParams(
            dimension_semantics=("parallel", "arbitrary"),
            vmem_limit_bytes=int(budget)),
        cost_estimate=pl.CostEstimate(
            flops=2 * M * M * D + 8 * M * M,
            transcendentals=M * M,                 # exp (cosine) / vrcp (cauchy)
            bytes_accessed=mm_bytes * M * D * ((M // TN) + (M // TM)) + 16 * M),
    )(*operands)

    # ---- momentum mixing (O(M) plain JAX) ----
    momentum = jnp.where(rho < 0, N / (N + omega), rho).astype(jnp.float32)
    z_hat = (s_inv / N) * (M - 1)                  # (N,) ; requires N == 2B
    z_col = ((1.0 - momentum) * z_i[:, 0] + momentum * z_hat).reshape(M, 1)

    # ---- rank-1 loss materialization (lane-dense row-tiled stores) ----
    TL = _pick_tl(M, budget)
    loss = pl.pallas_call(
        _loss_kernel,
        grid=(M // TL,),
        out_shape=jax.ShapeDtypeStruct((M, M), loss_dtype),
        in_specs=[
            pl.BlockSpec((1, M), lambda i: (0, 0)),            # qii row (resident)
            pl.BlockSpec((TL, 1), lambda i: (i, 0)),            # Z block
        ],
        out_specs=pl.BlockSpec((TL, M), lambda i: (i, 0)),
        compiler_params=pltpu.CompilerParams(
            dimension_semantics=("parallel",),
            vmem_limit_bytes=int(budget)),
        cost_estimate=pl.CostEstimate(
            flops=2 * M * M,
            transcendentals=M,
            bytes_accessed=jnp.dtype(loss_dtype).itemsize * M * M + 8 * M),
    )(qii_row.reshape(1, M), z_col)

    qii = qii_row                  # (M,) == q[i, (i+B)%M]
    zi = z_i[:, 0]                 # (M,) row sums of q (diagonal NOT zeroed)

    # ---- update_s (no-grad buffer side effect of the PyTorch forward) ----
    new_state = dict(state)
    new_state["qii"] = qii.mean()
    new_state["qij"] = zi.sum() / (M * M)              # q.mean()
    new_state["qcoeff"] = N / s_inv
    xi = jnp.sum(alpha * qii) + jnp.sum((1.0 - alpha) * zi / (M - 1))
    omega_new = alpha * M + (1.0 - alpha) * M
    mom2 = jnp.where(rho < 0, N / (N + omega_new), rho)
    new_state["xi"] = xi
    new_state["omega"] = omega_new
    new_state["s_inv"] = mom2 * s_inv + (1.0 - mom2) * N * (xi / omega_new)
    return loss, new_state


# ---------------------------------------------------------------------------
# Pure-JAX reference (verification)
# ---------------------------------------------------------------------------
def _reference(feats, state, metric):
    """Replica of the PyTorch forward. Returns (loss, q)."""
    M = feats.shape[0]
    B = M // 2
    if metric == "cosine":
        xn = feats / jnp.maximum(
            jnp.linalg.norm(feats, axis=1, keepdims=True), 1e-12)
        q = jnp.exp(xn @ xn.T / 0.5)
    elif metric == "cauchy":
        sq = jnp.sum(feats * feats, axis=1)
        d2 = jnp.maximum(sq[:, None] + sq[None, :] - 2.0 * feats @ feats.T, 0.0)
        q = 1.0 / (1.0 + d2)
    else:
        raise ValueError(metric)
    i = jnp.arange(M)
    qii = q[i, (i + B) % M]
    momentum = jnp.where(state["rho"] < 0,
                         state["N"] / (state["N"] + state["omega"]),
                         state["rho"])
    z_hat = state["s_inv"] / state["N"] * (M - 1)
    z_i = q.sum(axis=1)
    z = (1.0 - momentum) * z_i + momentum * z_hat
    return -qii[None, :] / z[:, None], q


if __name__ == "__main__":
    key = jax.random.PRNGKey(0)
    B, D = 4, 32
    M = 2 * B
    # N must equal 2B for the (2B,1)+(N,1) broadcast in the PyTorch code.
    N = M

    feats = jax.random.normal(key, (M, D), dtype=jnp.float32)
    idx = jnp.arange(M, dtype=jnp.int32)   # ignored by the global loss

    ok = True
    for metric in ("cauchy", "cosine"):
        state = init_state(N)
        loss, new_state = clsa_v3_global_loss(feats, idx, state, metric=metric)
        loss = jax.block_until_ready(loss)
        jax.block_until_ready(new_state["s_inv"])
        ref_loss, ref_q = _reference(feats, state, metric)
        ok &= bool(jnp.allclose(loss, ref_loss, rtol=1e-5, atol=1e-5))
        # Loose structural check on the q row-sum path (z_i -> qij statistic).
        ok &= bool(jnp.allclose(new_state["qij"], ref_q.mean(),
                                rtol=5e-2, atol=1e-3))

    if ok:
        print("KERNEL_OK")
    else:
        print("KERNEL_MISMATCH")
</pallas_src>

<mosaic_0001>
module attributes {stable_mosaic.version = 11 : i64} {
  func.func @_zi_cauchy_kernel(%arg0: i32, %arg1: i32, %arg2: memref<8x32xf32, #tpu.memory_space<vmem>>, %arg3: memref<32x8xf32, #tpu.memory_space<vmem>>, %arg4: memref<8x1xf32, #tpu.memory_space<vmem>>, %arg5: memref<1x8xf32, #tpu.memory_space<vmem>>, %arg6: memref<8x1xf32, #tpu.memory_space<vmem>>) attributes {dimension_semantics = [#tpu.dimension_semantics<parallel>, #tpu.dimension_semantics<arbitrary>], iteration_bounds = array<i64: 1, 1>, scalar_prefetch = 0 : i64, scratch_operands = 0 : i64, tpu.core_type = #tpu.core_type<tc>, window_params = [{transform_indices = @transform_0, window_bounds = array<i64: 8, 32>}, {transform_indices = @transform_1, window_bounds = array<i64: 32, 8>}, {transform_indices = @transform_2, window_bounds = array<i64: 8, 1>}, {transform_indices = @transform_3, window_bounds = array<i64: 1, 8>}, {transform_indices = @transform_4, window_bounds = array<i64: 8, 1>}]} {
    %c0_i32 = arith.constant 0 : i32
    %0 = arith.cmpi eq, %arg1, %c0_i32 : i32
    %1 = arith.extui %0 : i1 to i32
    %c0_i32_0 = arith.constant 0 : i32
    %2 = arith.cmpi ne, %1, %c0_i32_0 : i32
    scf.if %2 {
      %cst_17 = arith.constant 0.000000e+00 : f32
      %28 = vector.broadcast %cst_17 : f32 to vector<8x1xf32>
      %c0_18 = arith.constant 0 : index
      %c0_19 = arith.constant 0 : index
      %29 = vector.load %arg6[%c0_18, %c0_19] : memref<8x1xf32, #tpu.memory_space<vmem>>, vector<8x1xf32>
      tpu.vector_store %arg6[%c0_18, %c0_19], %28 {strides = array<i32>} : memref<8x1xf32, #tpu.memory_space<vmem>>, vector<8x1xf32>,
    } else {
    }
    %c0 = arith.constant 0 : index
    %c0_1 = arith.constant 0 : index
    %3 = vector.load %arg2[%c0, %c0_1] : memref<8x32xf32, #tpu.memory_space<vmem>>, vector<8x32xf32>
    %c0_2 = arith.constant 0 : index
    %c0_3 = arith.constant 0 : index
    %4 = vector.load %arg3[%c0_2, %c0_3] : memref<32x8xf32, #tpu.memory_space<vmem>>, vector<32x8xf32>
    %cst = arith.constant dense<0.000000e+00> : vector<8x8xf32>
    %5 = tpu.matmul %3, %4, %cst {dimension_numbers = #tpu.dot_dimension_numbers<[1], [0], [0], [1], [0, 0, 1, 1], [], []>} : vector<8x32xf32>, vector<32x8xf32>, vector<8x8xf32> -> vector<8x8xf32>
    %c0_4 = arith.constant 0 : index
    %c0_5 = arith.constant 0 : index
    %6 = vector.load %arg4[%c0_4, %c0_5] : memref<8x1xf32, #tpu.memory_space<vmem>>, vector<8x1xf32>
    %c0_6 = arith.constant 0 : index
    %c0_7 = arith.constant 0 : index
    %7 = vector.load %arg5[%c0_6, %c0_7] : memref<1x8xf32, #tpu.memory_space<vmem>>, vector<1x8xf32>
    %8 = vector.broadcast %6 : vector<8x1xf32> to vector<8x8xf32>
    %9 = vector.broadcast %7 : vector<1x8xf32> to vector<8x8xf32>
    %10 = arith.addf %8, %9 : vector<8x8xf32>
    %cst_8 = arith.constant 2.000000e+00 : f32
    %11 = vector.broadcast %cst_8 : f32 to vector<8x8xf32>
    %12 = arith.mulf %11, %5 : vector<8x8xf32>
    %13 = arith.subf %10, %12 : vector<8x8xf32>
    %cst_9 = arith.constant 0.000000e+00 : f32
    %14 = vector.broadcast %cst_9 : f32 to vector<8x8xf32>
    %15 = arith.maximumf %13, %14 : vector<8x8xf32>
    %cst_10 = arith.constant 1.000000e+00 : f32
    %16 = vector.broadcast %cst_10 : f32 to vector<8x8xf32>
    %17 = arith.addf %16, %15 : vector<8x8xf32>
    %18 = tpu.reciprocal %17 {approx = true} : vector<8x8xf32> -> vector<8x8xf32>
    %19 = arith.mulf %17, %18 : vector<8x8xf32>
    %cst_11 = arith.constant 2.000000e+00 : f32
    %20 = vector.broadcast %cst_11 : f32 to vector<8x8xf32>
    %21 = arith.subf %20, %19 : vector<8x8xf32>
    %22 = arith.mulf %18, %21 : vector<8x8xf32>
    %c0_12 = arith.constant 0 : index
    %c0_13 = arith.constant 0 : index
    %23 = vector.load %arg6[%c0_12, %c0_13] : memref<8x1xf32, #tpu.memory_space<vmem>>, vector<8x1xf32>
    %cst_14 = arith.constant dense<0.000000e+00> : vector<8xf32>
    %24 = vector.multi_reduction <add>, %22, %cst_14 [1] : vector<8x8xf32> to vector<8xf32>
    %25 = vector.shape_cast %24 : vector<8xf32> to vector<8x1xf32>
    %26 = arith.addf %23, %25 : vector<8x1xf32>
    %c0_15 = arith.constant 0 : index
    %c0_16 = arith.constant 0 : index
    %27 = vector.load %arg6[%c0_15, %c0_16] : memref<8x1xf32, #tpu.memory_space<vmem>>, vector<8x1xf32>
    tpu.vector_store %arg6[%c0_15, %c0_16], %26 {strides = array<i32>} : memref<8x1xf32, #tpu.memory_space<vmem>>, vector<8x1xf32>,
    return
  }
  func.func @transform_0(%arg0: i32, %arg1: i32) -> (i32, i32) {
    %c0_i32 = arith.constant 0 : i32
    %c0_i32_0 = arith.constant 0 : i32
    return %arg0, %c0_i32 : i32, i32
  }
  func.func @transform_1(%arg0: i32, %arg1: i32) -> (i32, i32) {
    %c0_i32 = arith.constant 0 : i32
    %c0_i32_0 = arith.constant 0 : i32
    return %c0_i32, %arg1 : i32, i32
  }
  func.func @transform_2(%arg0: i32, %arg1: i32) -> (i32, i32) {
    %c0_i32 = arith.constant 0 : i32
    %c0_i32_0 = arith.constant 0 : i32
    return %arg0, %c0_i32 : i32, i32
  }
  func.func @transform_3(%arg0: i32, %arg1: i32) -> (i32, i32) {
    %c0_i32 = arith.constant 0 : i32
    %c0_i32_0 = arith.constant 0 : i32
    return %c0_i32, %arg1 : i32, i32
  }
  func.func @transform_4(%arg0: i32, %arg1: i32) -> (i32, i32) {
    %c0_i32 = arith.constant 0 : i32
    %c0_i32_0 = arith.constant 0 : i32
    return %arg0, %c0_i32 : i32, i32
  }
}

</mosaic_0001>

<llo_original>
// kernel: tpu_custom_call.1
$region0: #{tpu_custom_call.1}
  #allocation0 [shape = 'u32[]', space=smem, size = 0x4, offset = 0x4, fixed_abs, tag = 'smem constant byte address 0x4 - core index']
  #allocation1 [shape = 'u32[144,128]{1,0:T(1,128)}', space=vmem, size = 0x12000, scoped, tag = 'internal scratch']
  %s0 = inlined_call_operand.vmem [shape: f32[8,32], index: 0, kind: input, shape index: {}]
  %s1 = inlined_call_operand.vmem [shape: f32[32,8], index: 1, kind: input, shape index: {}]
  %s2 = inlined_call_operand.vmem [shape: f32[8,1], index: 2, kind: input, shape index: {}]
  %s3 = inlined_call_operand.vmem [shape: f32[1,8], index: 3, kind: input, shape index: {}]
  %s4 = inlined_call_operand.vmem [shape: f32[8,1], index: 4, kind: output, shape index: {}]
  %s5 = sld [smem:[#allocation0]]
  $region30: #{tpu_custom_call.1} parent=0
    _
  %s7 = ssub.s32 1, %s5
  %s8 = scalar_select 0, %s7, %s5
  // Predicated region
  $region2: #{tpu_custom_call.1} parent=0 // pred_check
    _
  $region3: #{tpu_custom_call.1} parent=0 // pred_check_branch
    %10 = sbr.rel (0) target = $region5
  $region4: #{tpu_custom_call.1} parent=0 // pred_region
    _
  $region5: #{tpu_custom_call.1} parent=0 // pred_fallthru
    _
  // Predicated region
  $region6: #{tpu_custom_call.1} parent=0 // pred_check
    _
  $region7: #{tpu_custom_call.1} parent=0 // pred_check_branch
    %12 = sbr.rel (0) target = $region9
  $region8: #{tpu_custom_call.1} parent=0 // pred_region
    _
  $region9: #{tpu_custom_call.1} parent=0 // pred_fallthru
    _
  // Predicated region
  $region10: #{tpu_custom_call.1} parent=0 // pred_check
    _
  $region11: #{tpu_custom_call.1} parent=0 // pred_check_branch
    %14 = sbr.rel (0) target = $region13
  $region12: #{tpu_custom_call.1} parent=0 // pred_region
    _
  $region13: #{tpu_custom_call.1} parent=0 // pred_fallthru
    _
  // Predicated region
  $region14: #{tpu_custom_call.1} parent=0 // pred_check
    _
  $region15: #{tpu_custom_call.1} parent=0 // pred_check_branch
    %16 = sbr.rel (0) target = $region17
  $region16: #{tpu_custom_call.1} parent=0 // pred_region
    _
  $region17: #{tpu_custom_call.1} parent=0 // pred_fallthru
    _
  %p17 = scmp.eq.s32.totalorder 0, 0
  // Predicated region
  $region18: #{tpu_custom_call.1} parent=0 // pred_check
    %p18 = pneg %p17
  $region19: #{tpu_custom_call.1} parent=0 // pred_check_branch
    %20 = sbr.rel (%p18) target = $region21
  $region20: #{tpu_custom_call.1} parent=0 // pred_region
    %vm21 = vcmask 7168
    %22 = vst.msk [vmem:[%s4] sm:$0xff] %vm21, 0.0
  $region21: #{tpu_custom_call.1} parent=0 // pred_fallthru
    _
  %v23 = vld [vmem:[%s0] sm:$0xff]
  %v24 = vld [vmem:[%s1] sm:$0xff]
  %v25 = vld [vmem:[%s1 + $0x8] sm:$0xff]
  %v26 = vld [vmem:[%s1 + $0x10] sm:$0xff]
  %v27 = vld [vmem:[%s1 + $0x18] sm:$0xff]
  %vm28 = vcmask 261120
  %v30 = vsel %vm28, %v23, 0
  %32 = vmatprep.subr.mxu0 0.0
  %33 = vmatpush1.msra.mxu0 %v24
  %34 = vmatprep.subr.mxu0 0.0
  %35 = vmatpush1.msra.mxu0 %v25
  %36 = vmatprep.subr.mxu0 0.0
  %37 = vmatpush1.msra.mxu0 %v26
  %38 = vmatprep.subr.mxu0 0.0
  %39 = vmatpush1.msra.mxu0 %v27
  %40 = vmatprep.subr.mxu0 0.0
  %41 = vmatpush1.msra.mxu0 0.0
  %42 = vmatprep.subr.mxu0 0.0
  %43 = vmatpush1.msra.mxu0 0.0
  %44 = vmatprep.subr.mxu0 0.0
  %45 = vmatpush1.msra.mxu0 0.0
  %46 = vmatprep.subr.mxu0 0.0
  %47 = vmatpush1.msra.mxu0 0.0
  %48 = vmatprep.subr.mxu0 0.0
  %49 = vmatpush1.msra.mxu0 0.0
  %50 = vmatprep.subr.mxu0 0.0
  %51 = vmatpush1.msra.mxu0 0.0
  %52 = vmatprep.subr.mxu0 0.0
  %53 = vmatpush1.msra.mxu0 0.0
  %54 = vmatprep.subr.mxu0 0.0
  %55 = vmatpush1.msra.mxu0 0.0
  %56 = vmatprep.subr.mxu0 0.0
  %57 = vmatpush1.msra.mxu0 0.0
  %58 = vmatprep.subr.mxu0 0.0
  %59 = vmatpush1.msra.mxu0 0.0
  %60 = vmatprep.subr.mxu0 0.0
  %61 = vmatpush1.msra.mxu0 0.0
  %62 = vmatprep.subr.mxu0 0.0
  %63 = vmatpush1.msra.mxu0 0.0
  %64 = vmatprep.subr.mxu0 0.0
  %65 = vmatpush1.msra.mxu0 0.0
  %66 = vmatprep.subr.mxu0 0.0
  %67 = vmatpush1.msra.mxu0 0.0
  %68 = vmatprep.subr.mxu0 0.0
  %69 = vmatpush1.msra.mxu0 0.0
  %70 = vmatprep.subr.mxu0 0.0
  %71 = vmatpush1.msra.mxu0 0.0
  %72 = vmatprep.subr.mxu0 0.0
  %73 = vmatpush1.msra.mxu0 0.0
  %74 = vmatprep.subr.mxu0 0.0
  %75 = vmatpush1.msra.mxu0 0.0
  %76 = vmatprep.subr.mxu0 0.0
  %77 = vmatpush1.msra.mxu0 0.0
  %78 = vmatprep.subr.mxu0 0.0
  %79 = vmatpush1.msra.mxu0 0.0
  %80 = vmatprep.subr.mxu0 0.0
  %81 = vmatpush1.msra.mxu0 0.0
  %82 = vmatprep.subr.mxu0 0.0
  %83 = vmatpush1.msra.mxu0 0.0
  %84 = vmatprep.subr.mxu0 0.0
  %85 = vmatpush1.msra.mxu0 0.0
  %86 = vmatprep.subr.mxu0 0.0
  %87 = vmatpush1.msra.mxu0 0.0
  %88 = vmatprep.subr.mxu0 0.0
  %89 = vmatpush1.msra.mxu0 0.0
  %90 = vmatprep.subr.mxu0 0.0
  %91 = vmatpush1.msra.mxu0 0.0
  %92 = vmatprep.subr.mxu0 0.0
  %93 = vmatpush1.msra.mxu0 0.0
  %94 = vmatprep.subr.mxu0 0.0
  %95 = vmatpush1.msra.mxu0 0.0
  %96 = vmatprep.mubr.f32.mxu0 0.0
  %97 = vmatmul.mubr.f32.gmra.mrb[0].mxu0 %v30
  %v98 = vpop.f32.mrb[0].mxu0
  %v99 = vadd.f32 0.0, %v98
  %v100 = vpop.f32.mrb[0].mxu0
  %101 = vdwg.mxu0
  %v102 = vld [vmem:[%s2] sm:$0xff]
  %v103 = vld [vmem:[%s3] sm:$0x1]
  %105 = vset.pattern.permute.xlu0 0
  %106 = vperm.xlu0 %105, %v102
  %v107 = vpop.permute.xlu0 %106
  %v110 = vlaneseq
  %v111 = vshrl.u32 %v110, 7
  %v112 = vsub.s32 0, %v111
  %v113 = vrot.slane %v103, %v112
  %v115 = vadd.f32 %v107, %v113
  %v116 = vmul.f32 %v99, 2.0
  %v117 = vsub.f32 %v115, %v116
  %v118 = vmax.f32 %v117, 0.0
  %v119 = vadd.f32 %v118, 1.0
  %v120 = vrcp.pop %v119
  %v121 = vmul.f32 %v119, %v120
  %v122 = vsub.f32 2.0, %v121
  %v123 = vmul.f32 %v120, %v122
  %v124 = vld [vmem:[%s4] sm:$0xff]
  %vm125 = vcmask 64512
  %v126 = vsel %vm125, %v123, 0.0
  %127 = vadd.xlane.f32.xlu0 %v126
  %v128 = vpop.xlane.xlu0 %127
  %v129 = vadd.f32 %v124, %v128
  %vm130 = vcmask 7168
  %131 = vst.msk [vmem:[%s4] sm:$0xff] %vm130, %v129
  // Predicated region
  $region22: #{tpu_custom_call.1} parent=0 // pred_check
    _
  $region23: #{tpu_custom_call.1} parent=0 // pred_check_branch
    %133 = sbr.rel (0) target = $region25
  $region24: #{tpu_custom_call.1} parent=0 // pred_region
    _
  $region25: #{tpu_custom_call.1} parent=0 // pred_fallthru
    _
  // Predicated region
  $region26: #{tpu_custom_call.1} parent=0 // pred_check
    _
  $region27: #{tpu_custom_call.1} parent=0 // pred_check_branch
    %135 = sbr.rel (0) target = $region29
  $region28: #{tpu_custom_call.1} parent=0 // pred_region
    _
  $region29: #{tpu_custom_call.1} parent=0 // pred_fallthru
    _

</llo_original>
